<compile_context>
chip_gen: v5e
topology: v5e:2x2
jax: 0.10.0
libtpu: 0.0.40
codegen_flags: <defaults>
</compile_context>

<pallas_src>
import functools

import jax
import jax.numpy as jnp
from jax.experimental import pallas as pl
from jax.experimental.pallas import tpu as pltpu

_EPS = 1e-5
_LANES = 128
_SUBLANES = 8
_BLOCK_ROWS = 4096   # (4096, 128) f32 = 2 MiB per input per pipeline buffer.
_NCORES = 2          # leading "parallel" grid axis; sharded across TCs on v7x.


def _mse_sums_single_kernel(x_ref, y_ref, out_ref):
    # Whole array fits in one block: straight reduce, no grid state.
    out_ref[0, 0] = jnp.sum(x_ref[...].astype(jnp.float32))
    out_ref[0, 1] = jnp.sum(y_ref[...].astype(jnp.float32))


def _mse_sums_tiled_kernel(x_ref, y_ref, out_ref, accx_ref, accy_ref, *,
                           n_rows, n_blocks):
    c = pl.program_id(0)                 # core-shard index (parallel axis)
    j = pl.program_id(1)                 # block step within this shard
    blocks_per_core = pl.num_programs(1)
    blk = c * blocks_per_core + j        # logical block index (may be >= n_blocks)

    @pl.when(j == 0)
    def _():
        accx_ref[...] = jnp.zeros_like(accx_ref)
        accy_ref[...] = jnp.zeros_like(accy_ref)

    # Hot path: full, in-range block.  Pure VPU adds into (8,128) partials; the
    # reshape maps exactly onto (8,128) vreg tiles (no relayout copy).
    @pl.when((blk + 1) * _BLOCK_ROWS <= n_rows)
    def _():
        x = x_ref[...].astype(jnp.float32)
        y = y_ref[...].astype(jnp.float32)
        accx_ref[...] += jnp.sum(x.reshape(-1, _SUBLANES, _LANES), axis=0)
        accy_ref[...] += jnp.sum(y.reshape(-1, _SUBLANES, _LANES), axis=0)

    # Cold path: the single ragged tail block.  Static branch (only emitted
    # when a tail exists) and runtime-skipped for every other step.
    if n_rows % _BLOCK_ROWS != 0:
        @pl.when(blk == n_blocks - 1)
        def _():
            row = blk * _BLOCK_ROWS + jax.lax.broadcasted_iota(
                jnp.int32, (_BLOCK_ROWS, _LANES), 0)
            valid = row < n_rows
            x = jnp.where(valid, x_ref[...].astype(jnp.float32), 0.0)
            y = jnp.where(valid, y_ref[...].astype(jnp.float32), 0.0)
            accx_ref[...] += jnp.sum(x.reshape(-1, _SUBLANES, _LANES), axis=0)
            accy_ref[...] += jnp.sum(y.reshape(-1, _SUBLANES, _LANES), axis=0)

    # Single cross-lane reduce + scalar writes, once per core-shard.
    @pl.when(j == blocks_per_core - 1)
    def _():
        out_ref[0, 0] = jnp.sum(accx_ref[...])
        out_ref[0, 1] = jnp.sum(accy_ref[...])


def _flatten_lanes(a):
    """Flatten to (rows, 128) in native dtype, plus an optional <128 remainder.

    The reshape is metadata-only when a.size % 128 == 0.  Otherwise the short
    remainder is returned separately (summed by the wrapper) instead of
    padding/copying the whole array in HBM.
    """
    flat = jnp.ravel(a)
    n = flat.size
    if n == 0:
        return jnp.zeros((1, _LANES), a.dtype), None
    rows = n // _LANES
    rem = n - rows * _LANES
    if rem == 0:
        return flat.reshape(rows, _LANES), None
    if rows == 0:
        # Tiny input (<128 elems): pad up to a single lane row (negligible).
        return jnp.pad(flat, (0, _LANES - rem)).reshape(1, _LANES), None
    return flat[: rows * _LANES].reshape(rows, _LANES), flat[rows * _LANES:]


def mse_loss(x, y):
    """Pallas implementation of MSELoss.forward(x, y) -> scalar f32."""
    xr, x_rem = _flatten_lanes(x)
    yr, y_rem = _flatten_lanes(y)

    rows = max(xr.shape[0], yr.shape[0])
    # Degenerate path: x and y with different element counts (the module only
    # takes independent sums, so this is legal).  Zero rows don't change sums.
    if xr.shape[0] != rows:
        xr = jnp.pad(xr, ((0, rows - xr.shape[0]), (0, 0)))
    if yr.shape[0] != rows:
        yr = jnp.pad(yr, ((0, rows - yr.shape[0]), (0, 0)))

    if rows <= _BLOCK_ROWS:
        # Small-input fast path: one block holding the whole arrays.
        sums = pl.pallas_call(
            _mse_sums_single_kernel,
            out_shape=jax.ShapeDtypeStruct((1, 2), jnp.float32),
            grid_spec=pltpu.PrefetchScalarGridSpec(
                num_scalar_prefetch=0,
                grid=(1,),
                in_specs=[
                    pl.BlockSpec((rows, _LANES), lambda i: (0, 0)),
                    pl.BlockSpec((rows, _LANES), lambda i: (0, 0)),
                ],
                out_specs=pl.BlockSpec((1, 2), lambda i: (0, 0),
                                       memory_space=pltpu.SMEM),
            ),
            compiler_params=pltpu.CompilerParams(
                dimension_semantics=("arbitrary",)),
        )(xr, yr)
    else:
        n_blocks = pl.cdiv(rows, _BLOCK_ROWS)
        blocks_per_core = pl.cdiv(n_blocks, _NCORES)

        def in_map(c, j):
            # Clamp: an out-of-range shard step re-reads the last block, which
            # the kernel masks out (contributes zero).
            return (jnp.minimum(c * blocks_per_core + j, n_blocks - 1), 0)

        kernel = functools.partial(
            _mse_sums_tiled_kernel, n_rows=rows, n_blocks=n_blocks)

        sums = pl.pallas_call(
            kernel,
            out_shape=jax.ShapeDtypeStruct((_NCORES, 2), jnp.float32),
            grid_spec=pltpu.PrefetchScalarGridSpec(
                num_scalar_prefetch=0,
                grid=(_NCORES, blocks_per_core),
                in_specs=[
                    pl.BlockSpec((_BLOCK_ROWS, _LANES), in_map),
                    pl.BlockSpec((_BLOCK_ROWS, _LANES), in_map),
                ],
                out_specs=pl.BlockSpec((1, 2), lambda c, j: (c, 0),
                                       memory_space=pltpu.SMEM),
                scratch_shapes=[
                    pltpu.VMEM((_SUBLANES, _LANES), jnp.float32),
                    pltpu.VMEM((_SUBLANES, _LANES), jnp.float32),
                ],
            ),
            # Leading axis "parallel": on v7x the two TensorCores each stream
            # half of the blocks; on v5e/v6e it just runs sequentially.
            compiler_params=pltpu.CompilerParams(
                dimension_semantics=("parallel", "arbitrary")),
        )(xr, yr)

    # Scalar epilogue (tiny XLA ops): combine per-core partials + remainders.
    tx = jnp.sum(sums[:, 0])
    ty = jnp.sum(sums[:, 1])
    if x_rem is not None:
        tx = tx + jnp.sum(x_rem.astype(jnp.float32))
    if y_rem is not None:
        ty = ty + jnp.sum(y_rem.astype(jnp.float32))
    err = (tx - ty) * (tx - ty)
    return err / (ty * ty + jnp.float32(_EPS))


if __name__ == "__main__":
    key = jax.random.PRNGKey(0)
    k1, k2, k3, k4 = jax.random.split(key, 4)

    def reference(x, y):
        tx = jnp.sum(x.astype(jnp.float32))
        ty = jnp.sum(y.astype(jnp.float32))
        return (tx - ty) ** 2 / (ty ** 2 + _EPS)

    # 1) Small NCHW density-map-like inputs -> single-block fast path.
    x_small = jax.random.uniform(k1, (2, 4, 16, 16), dtype=jnp.float32)
    y_small = jax.random.uniform(k2, (2, 4, 16, 16), dtype=jnp.float32)
    loss_small = jax.block_until_ready(mse_loss(x_small, y_small))
    ref_small = reference(x_small, y_small)
    assert jnp.allclose(loss_small, ref_small, rtol=1e-5, atol=1e-6), (
        loss_small, ref_small)

    # 2) Moderate input whose size is not a multiple of 128 and whose rows
    #    exceed one block -> tiled 2-core-sharded path with a ragged tail
    #    block and a wrapper-side lane remainder.
    x_big = jax.random.uniform(k3, (2, 5, 229, 233), dtype=jnp.float32)
    y_big = 0.9 * jax.random.uniform(k4, (2, 5, 229, 233), dtype=jnp.float32)
    loss_big = jax.block_until_ready(mse_loss(x_big, y_big))
    ref_big = reference(x_big, y_big)
    assert jnp.allclose(loss_big, ref_big, rtol=1e-3, atol=1e-6), (
        loss_big, ref_big)

    print("KERNEL_OK")
</pallas_src>

<mosaic_0001>
module attributes {stable_mosaic.version = 11 : i64} {
  func.func @_mse_sums_single_kernel(%arg0: i32, %arg1: memref<16x128xf32, #tpu.memory_space<vmem>>, %arg2: memref<16x128xf32, #tpu.memory_space<vmem>>, %arg3: memref<1x2xf32, #tpu.memory_space<smem>>) attributes {dimension_semantics = [#tpu.dimension_semantics<arbitrary>], iteration_bounds = array<i64: 1>, scalar_prefetch = 0 : i64, scratch_operands = 0 : i64, tpu.core_type = #tpu.core_type<tc>, window_params = [{pipeline_mode = #tpu.pipeline_mode<synchronous>, transform_indices = @transform_0, window_bounds = array<i64: 16, 128>}, {pipeline_mode = #tpu.pipeline_mode<synchronous>, transform_indices = @transform_1, window_bounds = array<i64: 16, 128>}, {transform_indices = @transform_2, window_bounds = array<i64: 1, 2>}]} {
    %c0 = arith.constant 0 : index
    %c0_0 = arith.constant 0 : index
    %0 = vector.load %arg1[%c0, %c0_0] : memref<16x128xf32, #tpu.memory_space<vmem>>, vector<16x128xf32>
    %1 = vector.shape_cast %0 : vector<16x128xf32> to vector<1x16x128xf32>
    %cst = arith.constant dense<0.000000e+00> : vector<1xf32>
    %2 = vector.multi_reduction <add>, %1, %cst [1, 2] : vector<1x16x128xf32> to vector<1xf32>
    %3 = vector.shape_cast %2 : vector<1xf32> to vector<1x1x1xf32>
    %4 = vector.extract %3[0, 0, 0] : f32 from vector<1x1x1xf32>
    %c0_1 = arith.constant 0 : index
    %c0_2 = arith.constant 0 : index
    %5 = memref.load %arg3[%c0_1, %c0_2] : memref<1x2xf32, #tpu.memory_space<smem>>
    memref.store %4, %arg3[%c0_1, %c0_2] : memref<1x2xf32, #tpu.memory_space<smem>>
    %c0_3 = arith.constant 0 : index
    %c0_4 = arith.constant 0 : index
    %6 = vector.load %arg2[%c0_3, %c0_4] : memref<16x128xf32, #tpu.memory_space<vmem>>, vector<16x128xf32>
    %7 = vector.shape_cast %6 : vector<16x128xf32> to vector<1x16x128xf32>
    %cst_5 = arith.constant dense<0.000000e+00> : vector<1xf32>
    %8 = vector.multi_reduction <add>, %7, %cst_5 [1, 2] : vector<1x16x128xf32> to vector<1xf32>
    %9 = vector.shape_cast %8 : vector<1xf32> to vector<1x1x1xf32>
    %10 = vector.extract %9[0, 0, 0] : f32 from vector<1x1x1xf32>
    %c0_6 = arith.constant 0 : index
    %c1 = arith.constant 1 : index
    %11 = memref.load %arg3[%c0_6, %c1] : memref<1x2xf32, #tpu.memory_space<smem>>
    memref.store %10, %arg3[%c0_6, %c1] : memref<1x2xf32, #tpu.memory_space<smem>>
    return
  }
  func.func @transform_0(%arg0: i32) -> (i32, i32) {
    %c0_i32 = arith.constant 0 : i32
    %c0_i32_0 = arith.constant 0 : i32
    %c0_i32_1 = arith.constant 0 : i32
    return %c0_i32, %c0_i32_0 : i32, i32
  }
  func.func @transform_1(%arg0: i32) -> (i32, i32) {
    %c0_i32 = arith.constant 0 : i32
    %c0_i32_0 = arith.constant 0 : i32
    %c0_i32_1 = arith.constant 0 : i32
    return %c0_i32, %c0_i32_0 : i32, i32
  }
  func.func @transform_2(%arg0: i32) -> (i32, i32) {
    %c0_i32 = arith.constant 0 : i32
    %c0_i32_0 = arith.constant 0 : i32
    %c0_i32_1 = arith.constant 0 : i32
    return %c0_i32, %c0_i32_0 : i32, i32
  }
}

</mosaic_0001>

<llo_original>
// kernel: tpu_custom_call.1
$region0: #{tpu_custom_call.1}
  #allocation0 [shape = 'u32[]', space=smem, size = 0x4, offset = 0x4, fixed_abs, tag = 'smem constant byte address 0x4 - core index']
  #allocation1 [shape = 'u32[72,128]{1,0:T(1,128)}', space=vmem, size = 0x9000, scoped, tag = 'internal scratch']
  %s0 = inlined_call_operand.hbm [shape: f32[16,128], index: 0, kind: input, shape index: {}]
  %s1 = inlined_call_operand.hbm [shape: f32[16,128], index: 1, kind: input, shape index: {}]
  %s2 = inlined_call_operand.hbm [shape: f32[1,2], index: 2, kind: output, shape index: {}]
  %s3 = sld [smem:[#allocation0]]
  $region26: #{tpu_custom_call.1} parent=0
    _
  %s5 = ssub.s32 1, %s3
  %s6 = scalar_select 0, %s5, %s3
  $region1: #{tpu_custom_call.1} parent=0
    #allocation2 [shape = 'u8[8192]{0}', space=vmem, size = 0x2000, scoped, tag = 'input window, operand 0, single buffered']
    #allocation3 [shape = 's32[1]{0}', space=sflag, size = 0x4, scoped, tag = 'scoped memory for tpu_custom_call.1']
    #allocation4 [shape = 's32[1]{0}', space=sflag, size = 0x4, scoped, tag = 'scoped memory for tpu_custom_call.1']
    #allocation5 [shape = 'u8[8192]{0}', space=vmem, size = 0x2000, scoped, tag = 'input window, operand 1, single buffered']
    #allocation6 [shape = 's32[1]{0}', space=sflag, size = 0x4, scoped, tag = 'scoped memory for tpu_custom_call.1']
    #allocation7 [shape = 'u8[512]{0}', space=smem, size = 0x200, scoped, tag = 'output window, operand 0, single buffered']
    %7 = vsyncpa [#allocation3], 0
    %8 = vsyncpa [#allocation6], 0
    %9 = vsyncpa [#allocation4], 0
    // Predicated region
    $region2: #{tpu_custom_call.1} parent=1 // pred_check
      _
    $region3: #{tpu_custom_call.1} parent=1 // pred_check_branch
      %11 = sbr.rel (0) target = $region5
    $region4: #{tpu_custom_call.1} parent=1 // pred_region
      %13 = vsyncadd [#allocation3], 0
      %s14 = sshll.u32 %s0, 4
      %s15 = int_to_ptr.hbm [resolvable:$true] %s14
      %s16 = sshll.u32 [#allocation2], 4
      %s17 = int_to_ptr.vmem [resolvable:$true] %s16
      %22 = dma.hbm_to_vmem [thread:$0]  %s15, 256, %s17, [#allocation3], 128, 128, 8
    $region5: #{tpu_custom_call.1} parent=1 // pred_fallthru
      _
    // Predicated region
    $region6: #{tpu_custom_call.1} parent=1 // pred_check
      _
    $region7: #{tpu_custom_call.1} parent=1 // pred_check_branch
      %24 = sbr.rel (0) target = $region9
    $region8: #{tpu_custom_call.1} parent=1 // pred_region
      %26 = vsyncadd [#allocation6], 0
      %s27 = sshll.u32 %s1, 4
      %s28 = int_to_ptr.hbm [resolvable:$true] %s27
      %s29 = sshll.u32 [#allocation5], 4
      %s30 = int_to_ptr.vmem [resolvable:$true] %s29
      %35 = dma.hbm_to_vmem [thread:$0]  %s28, 256, %s30, [#allocation6], 128, 128, 8
    $region9: #{tpu_custom_call.1} parent=1 // pred_fallthru
      _
    // Predicated region
    $region10: #{tpu_custom_call.1} parent=1 // pred_check
      _
    $region11: #{tpu_custom_call.1} parent=1 // pred_check_branch
      %37 = sbr.rel (0) target = $region13
    $region12: #{tpu_custom_call.1} parent=1 // pred_region
      %39 = dma.done [#allocation3], 256
    $region13: #{tpu_custom_call.1} parent=1 // pred_fallthru
      _
    // Predicated region
    $region14: #{tpu_custom_call.1} parent=1 // pred_check
      _
    $region15: #{tpu_custom_call.1} parent=1 // pred_check_branch
      %41 = sbr.rel (0) target = $region17
    $region16: #{tpu_custom_call.1} parent=1 // pred_region
      %43 = dma.done [#allocation6], 256
    $region17: #{tpu_custom_call.1} parent=1 // pred_fallthru
      _
    %v44 = vld [vmem:[#allocation2] sm:$0xff]
    %v45 = vld [vmem:[#allocation2 + $0x8] sm:$0xff]
    %v46 = vadd.f32 %v44, %v45
    %47 = vadd.xlane.f32.xlu0 %v46
    %v48 = vpop.xlane.xlu0 %47
    %v49 = vrot.slane %v48, 4
    %v50 = vadd.f32 %v48, %v49
    %v51 = vrot.slane %v50, 2
    %v52 = vadd.f32 %v50, %v51
    %v53 = vrot.slane %v52, 1
    %v54 = vadd.f32 %v52, %v53
    %s55 = vtos %v54
    %s56 = scalar_lea.smem [#allocation7], 0
    %57 = sst [smem:[%s56]] %s55
    %v58 = vld [vmem:[#allocation5] sm:$0xff]
    %v59 = vld [vmem:[#allocation5 + $0x8] sm:$0xff]
    %v60 = vadd.f32 %v58, %v59
    %61 = vadd.xlane.f32.xlu0 %v60
    %v62 = vpop.xlane.xlu0 %61
    %v63 = vrot.slane %v62, 4
    %v64 = vadd.f32 %v62, %v63
    %v65 = vrot.slane %v64, 2
    %v66 = vadd.f32 %v64, %v65
    %v67 = vrot.slane %v66, 1
    %v68 = vadd.f32 %v66, %v67
    %s69 = vtos %v68
    %s70 = scalar_lea.smem [#allocation7], 1
    %71 = sst [smem:[%s70]] %s69
    // Predicated region
    $region18: #{tpu_custom_call.1} parent=1 // pred_check
      _
    $region19: #{tpu_custom_call.1} parent=1 // pred_check_branch
      %73 = sbr.rel (0) target = $region21
    $region20: #{tpu_custom_call.1} parent=1 // pred_region
      %75 = vsyncadd [#allocation4], 0
      %s77 = sshll.u32 %s2, 4
      %s78 = int_to_ptr.hbm [resolvable:$true] %s77
      %80 = dma.smem_to_hbm [#allocation7], 16, %s78, [#allocation4]
    $region21: #{tpu_custom_call.1} parent=1 // pred_fallthru
      _
    // Predicated region
    $region22: #{tpu_custom_call.1} parent=1 // pred_check
      _
    $region23: #{tpu_custom_call.1} parent=1 // pred_check_branch
      %82 = sbr.rel (0) target = $region25
    $region24: #{tpu_custom_call.1} parent=1 // pred_region
      %84 = dma.done [#allocation4], 16
    $region25: #{tpu_custom_call.1} parent=1 // pred_fallthru
      _
    %85 = sfence
    %86 = vsyncpa [#allocation3], 1
    %87 = vsyncpa [#allocation6], 1
    %88 = vsyncpa [#allocation4], 1

</llo_original>
